<compile_context>
chip_gen: v6e
topology: v6e:2x2x1
jax: 0.10.0
libtpu: 0.0.40
codegen_flags: <defaults>
</compile_context>

<pallas_src>
import jax
import jax.numpy as jnp
from jax.experimental import pallas as pl
from jax.experimental.pallas import tpu as pltpu

LANE = 128
SUBLANE = 8
MAX_FC_TILE = 2048  # vocab-tile upper bound; sized for the 64 MiB v7x VMEM budget


def _round_up(x, m):
    return ((x + m - 1) // m) * m


def _pick_fc_tile(v_pad):
    t = min(v_pad, MAX_FC_TILE)
    while v_pad % t:
        t -= LANE
    return t


def decoder_kernel(x_ref, wih_ref, whh_ref, b_ref, h_ref, c_ref,
                   wfc_ref, bfc_ref,
                   pred_ref, h_out_ref, c_out_ref,
                   h_s):
    """Grid: (V_pad // TN,). LSTM step once at j==0; fc tile every step."""
    Hp = h_ref.shape[1]

    @pl.when(pl.program_id(0) == 0)
    def _():
        # gates = x @ W_ih^T + h @ W_hh^T + (b_ih + b_hh)   (f32 accumulation)
        gates = (jnp.dot(x_ref[...], wih_ref[...],
                         preferred_element_type=jnp.float32)
                 + jnp.dot(h_ref[...].astype(wih_ref.dtype), whh_ref[...],
                           preferred_element_type=jnp.float32)
                 + b_ref[...])                               # (Bp, 4*Hp)

        # PyTorch gate order: input, forget, cell(g), output.
        # Gates live at 128-aligned offsets g*Hp, so these slices are views.
        i_g = jax.nn.sigmoid(gates[:, 0 * Hp:1 * Hp])
        f_g = jax.nn.sigmoid(gates[:, 1 * Hp:2 * Hp])
        g_g = jnp.tanh(gates[:, 2 * Hp:3 * Hp])
        o_g = jax.nn.sigmoid(gates[:, 3 * Hp:4 * Hp])

        c_new = f_g * c_ref[...] + i_g * g_g                 # f32 elementwise
        h_new = o_g * jnp.tanh(c_new)

        c_out_ref[...] = c_new
        h_out_ref[...] = h_new
        h_s[...] = h_new.astype(h_s.dtype)                   # bf16 copy for MXU

    # fc projection for this vocab tile.
    pred_ref[...] = (jnp.dot(h_s[...], wfc_ref[...],
                             preferred_element_type=jnp.float32)
                     + bfc_ref[...])


def prepare_params(params, compute_dtype=jnp.bfloat16):
    """Once-per-model: transpose, sum biases, pad to lane multiples, cast to bf16."""
    emb = jnp.asarray(params["emb"], jnp.float32)            # (V, E)
    w_ih = jnp.asarray(params["w_ih"], jnp.float32)          # (4H, E)
    w_hh = jnp.asarray(params["w_hh"], jnp.float32)          # (4H, H)
    bias = jnp.asarray(params["b_ih"] + params["b_hh"], jnp.float32)   # (4H,)
    w_fc = jnp.asarray(params["w_fc"], jnp.float32)          # (V, H)
    b_fc = jnp.asarray(params["b_fc"], jnp.float32)          # (V,)

    V, E = emb.shape
    H = w_hh.shape[1]
    Ep = _round_up(E, LANE)
    Hp = _round_up(H, LANE)
    TN = _pick_fc_tile(_round_up(V, LANE))
    Vp = _round_up(V, TN)

    emb_p = jnp.zeros((V, Ep), jnp.float32).at[:, :E].set(emb).astype(compute_dtype)

    def gate_pad_cols(w_t, rows, rows_p):
        # w_t: (rows, 4H) -> (rows_p, 4*Hp); gate g placed at columns [g*Hp, g*Hp+H)
        out = jnp.zeros((rows_p, 4 * Hp), jnp.float32)
        for g in range(4):
            out = out.at[:rows, g * Hp:g * Hp + H].set(w_t[:, g * H:(g + 1) * H])
        return out

    wih_t = gate_pad_cols(w_ih.T, E, Ep).astype(compute_dtype)   # (Ep, 4Hp)
    whh_t = gate_pad_cols(w_hh.T, H, Hp).astype(compute_dtype)   # (Hp, 4Hp)

    b_p = jnp.zeros((1, 4 * Hp), jnp.float32)
    for g in range(4):
        b_p = b_p.at[0, g * Hp:g * Hp + H].set(bias[g * H:(g + 1) * H])

    wfc_t = (jnp.zeros((Hp, Vp), jnp.float32)
             .at[:H, :V].set(w_fc.T).astype(compute_dtype))      # (Hp, Vp)
    bfc_p = jnp.zeros((1, Vp), jnp.float32).at[0, :V].set(b_fc)  # (1, Vp)

    return {"emb": emb_p, "wih_t": wih_t, "whh_t": whh_t, "bias": b_p,
            "wfc_t": wfc_t, "bfc": bfc_p}


@jax.jit
def decoder_forward(prepared, trg, hidden, cell):
    """trg: (B,) int; hidden, cell: (1, B, H) f32 -> (pred (B,V), h (1,B,H), c (1,B,H))."""
    emb_p, wih_t, whh_t = prepared["emb"], prepared["wih_t"], prepared["whh_t"]
    bias, wfc_t, bfc = prepared["bias"], prepared["wfc_t"], prepared["bfc"]

    V, Ep = emb_p.shape
    Hp = whh_t.shape[0]
    Vp = wfc_t.shape[1]
    H = hidden.shape[-1]
    B = trg.shape[0]
    Bp = max(_round_up(B, SUBLANE), SUBLANE)
    TN = _pick_fc_tile(Vp)

    # Embedding gather in the wrapper (replaces the in-kernel one-hot matmul).
    # TODO(synk): PyTorch nn.Embedding raises on out-of-range ids; we clamp.
    ids = jnp.clip(trg.astype(jnp.int32), 0, V - 1)
    x = jnp.take(emb_p, ids, axis=0)                             # (B, Ep) bf16
    x_p = jnp.zeros((Bp, Ep), emb_p.dtype).at[:B].set(x)

    h0 = jnp.zeros((Bp, Hp), jnp.float32).at[:B, :H].set(hidden.reshape(B, H))
    c0 = jnp.zeros((Bp, Hp), jnp.float32).at[:B, :H].set(cell.reshape(B, H))

    fixed = lambda j: (0, 0)
    tiled = lambda j: (0, j)

    pred_p, h_new_p, c_new_p = pl.pallas_call(
        decoder_kernel,
        out_shape=(
            jax.ShapeDtypeStruct((Bp, Vp), jnp.float32),
            jax.ShapeDtypeStruct((Bp, Hp), jnp.float32),
            jax.ShapeDtypeStruct((Bp, Hp), jnp.float32),
        ),
        grid_spec=pltpu.PrefetchScalarGridSpec(
            num_scalar_prefetch=0,
            grid=(Vp // TN,),
            in_specs=[
                pl.BlockSpec((Bp, Ep), fixed),        # x (embedded)
                pl.BlockSpec((Ep, 4 * Hp), fixed),    # W_ih^T
                pl.BlockSpec((Hp, 4 * Hp), fixed),    # W_hh^T
                pl.BlockSpec((1, 4 * Hp), fixed),     # b_ih + b_hh
                pl.BlockSpec((Bp, Hp), fixed),        # h0
                pl.BlockSpec((Bp, Hp), fixed),        # c0
                pl.BlockSpec((Hp, TN), tiled),        # W_fc^T vocab tile (streamed)
                pl.BlockSpec((1, TN), tiled),         # b_fc vocab tile
            ],
            out_specs=(
                pl.BlockSpec((Bp, TN), tiled),        # prediction tile
                pl.BlockSpec((Bp, Hp), fixed),        # new hidden
                pl.BlockSpec((Bp, Hp), fixed),        # new cell
            ),
            scratch_shapes=[pltpu.VMEM((Bp, Hp), emb_p.dtype)],   # cached h_new (bf16)
        ),
        compiler_params=pltpu.CompilerParams(
            dimension_semantics=("arbitrary",)),
        input_output_aliases={4: 1, 5: 2},            # h0 -> h_out, c0 -> c_out
    )(x_p, wih_t, whh_t, bias, h0, c0, wfc_t, bfc)

    pred = pred_p[:B, :V]
    h_new = h_new_p[:B, :H].reshape(1, B, H)
    c_new = c_new_p[:B, :H].reshape(1, B, H)
    return pred, h_new, c_new


def init_params(key, output_dim, emb_dim, hidden_dim):
    ks = jax.random.split(key, 7)
    scale = 0.1
    return {
        "emb":  scale * jax.random.normal(ks[0], (output_dim, emb_dim), jnp.float32),
        "w_ih": scale * jax.random.normal(ks[1], (4 * hidden_dim, emb_dim), jnp.float32),
        "w_hh": scale * jax.random.normal(ks[2], (4 * hidden_dim, hidden_dim), jnp.float32),
        "b_ih": scale * jax.random.normal(ks[3], (4 * hidden_dim,), jnp.float32),
        "b_hh": scale * jax.random.normal(ks[4], (4 * hidden_dim,), jnp.float32),
        "w_fc": scale * jax.random.normal(ks[5], (output_dim, hidden_dim), jnp.float32),
        "b_fc": scale * jax.random.normal(ks[6], (output_dim,), jnp.float32),
    }


def _reference(params, trg, hidden, cell):
    """Pure-JAX f32 reference of the PyTorch Decoder forward."""
    x = params["emb"][trg]                                   # (B, E)
    h0 = hidden[0]
    c0 = cell[0]
    H = h0.shape[-1]
    gates = (x @ params["w_ih"].T + h0 @ params["w_hh"].T
             + params["b_ih"] + params["b_hh"])
    i_g = jax.nn.sigmoid(gates[:, 0:H])
    f_g = jax.nn.sigmoid(gates[:, H:2 * H])
    g_g = jnp.tanh(gates[:, 2 * H:3 * H])
    o_g = jax.nn.sigmoid(gates[:, 3 * H:4 * H])
    c1 = f_g * c0 + i_g * g_g
    h1 = o_g * jnp.tanh(c1)
    pred = h1 @ params["w_fc"].T + params["b_fc"]
    return pred, h1[None], c1[None]


if __name__ == "__main__":
    B = 2
    OUTPUT_DIM = 32   # vocab size
    EMB_DIM = 16
    HIDDEN_DIM = 32

    key = jax.random.PRNGKey(0)
    k_param, k_trg, k_h, k_c = jax.random.split(key, 4)

    params = init_params(k_param, OUTPUT_DIM, EMB_DIM, HIDDEN_DIM)
    prepared = prepare_params(params)

    trg = jax.random.randint(k_trg, (B,), 0, OUTPUT_DIM, dtype=jnp.int32)
    hidden = jax.random.normal(k_h, (1, B, HIDDEN_DIM), jnp.float32)
    cell = jax.random.normal(k_c, (1, B, HIDDEN_DIM), jnp.float32)

    pred, h_new, c_new = decoder_forward(prepared, trg, hidden, cell)
    jax.block_until_ready((pred, h_new, c_new))

    assert pred.shape == (B, OUTPUT_DIM)
    assert h_new.shape == (1, B, HIDDEN_DIM)
    assert c_new.shape == (1, B, HIDDEN_DIM)

    # Loose tolerance: weights stream as bf16, accumulation/gates are f32.
    p_ref, h_ref, c_ref = _reference(params, trg, hidden, cell)
    assert jnp.max(jnp.abs(pred - p_ref)) < 5e-2
    assert jnp.max(jnp.abs(h_new - h_ref)) < 5e-2
    assert jnp.max(jnp.abs(c_new - c_ref)) < 5e-2

    print("KERNEL_OK")
</pallas_src>

<mosaic_0001>
module attributes {stable_mosaic.version = 11 : i64} {
  func.func @decoder_kernel(%arg0: i32, %arg1: memref<8x128xbf16, #tpu.memory_space<vmem>>, %arg2: memref<128x512xbf16, #tpu.memory_space<vmem>>, %arg3: memref<128x512xbf16, #tpu.memory_space<vmem>>, %arg4: memref<1x512xf32, #tpu.memory_space<vmem>>, %arg5: memref<8x128xf32, #tpu.memory_space<vmem>>, %arg6: memref<8x128xf32, #tpu.memory_space<vmem>>, %arg7: memref<128x128xbf16, #tpu.memory_space<vmem>>, %arg8: memref<1x128xf32, #tpu.memory_space<vmem>>, %arg9: memref<8x128xf32, #tpu.memory_space<vmem>>, %arg10: memref<8x128xf32, #tpu.memory_space<vmem>>, %arg11: memref<8x128xf32, #tpu.memory_space<vmem>>, %arg12: memref<8x128xbf16, #tpu.memory_space<vmem>>) attributes {dimension_semantics = [#tpu.dimension_semantics<arbitrary>], iteration_bounds = array<i64: 1>, scalar_prefetch = 0 : i64, scratch_operands = 1 : i64, tpu.core_type = #tpu.core_type<tc>, window_params = [{pipeline_mode = #tpu.pipeline_mode<synchronous>, transform_indices = @transform_0, window_bounds = array<i64: 8, 128>}, {pipeline_mode = #tpu.pipeline_mode<synchronous>, transform_indices = @transform_1, window_bounds = array<i64: 128, 512>}, {pipeline_mode = #tpu.pipeline_mode<synchronous>, transform_indices = @transform_2, window_bounds = array<i64: 128, 512>}, {pipeline_mode = #tpu.pipeline_mode<synchronous>, transform_indices = @transform_3, window_bounds = array<i64: 1, 512>}, {pipeline_mode = #tpu.pipeline_mode<synchronous>, transform_indices = @transform_4, window_bounds = array<i64: 8, 128>}, {pipeline_mode = #tpu.pipeline_mode<synchronous>, transform_indices = @transform_5, window_bounds = array<i64: 8, 128>}, {transform_indices = @transform_6, window_bounds = array<i64: 128, 128>}, {transform_indices = @transform_7, window_bounds = array<i64: 1, 128>}, {transform_indices = @transform_8, window_bounds = array<i64: 8, 128>}, {pipeline_mode = #tpu.pipeline_mode<synchronous>, transform_indices = @transform_9, window_bounds = array<i64: 8, 128>}, {pipeline_mode = #tpu.pipeline_mode<synchronous>, transform_indices = @transform_10, window_bounds = array<i64: 8, 128>}]} {
    %c0_i32 = arith.constant 0 : i32
    %0 = arith.cmpi eq, %arg0, %c0_i32 : i32
    %1 = arith.extui %0 : i1 to i32
    %c0_i32_0 = arith.constant 0 : i32
    %2 = arith.cmpi ne, %1, %c0_i32_0 : i32
    scf.if %2 {
      %c0_8 = arith.constant 0 : index
      %c0_9 = arith.constant 0 : index
      %10 = vector.load %arg1[%c0_8, %c0_9] : memref<8x128xbf16, #tpu.memory_space<vmem>>, vector<8x128xbf16>
      %c0_10 = arith.constant 0 : index
      %c0_11 = arith.constant 0 : index
      %11 = vector.load %arg2[%c0_10, %c0_11] : memref<128x512xbf16, #tpu.memory_space<vmem>>, vector<128x512xbf16>
      %cst_12 = arith.constant dense<0.000000e+00> : vector<8x512xf32>
      %12 = tpu.matmul %10, %11, %cst_12 {dimension_numbers = #tpu.dot_dimension_numbers<[1], [0], [0], [1], [0, 0, 1, 1], [], []>} : vector<8x128xbf16>, vector<128x512xbf16>, vector<8x512xf32> -> vector<8x512xf32>
      %c0_13 = arith.constant 0 : index
      %c0_14 = arith.constant 0 : index
      %13 = vector.load %arg5[%c0_13, %c0_14] : memref<8x128xf32, #tpu.memory_space<vmem>>, vector<8x128xf32>
      %14 = arith.truncf %13 : vector<8x128xf32> to vector<8x128xbf16>
      %c0_15 = arith.constant 0 : index
      %c0_16 = arith.constant 0 : index
      %15 = vector.load %arg3[%c0_15, %c0_16] : memref<128x512xbf16, #tpu.memory_space<vmem>>, vector<128x512xbf16>
      %cst_17 = arith.constant dense<0.000000e+00> : vector<8x512xf32>
      %16 = tpu.matmul %14, %15, %cst_17 {dimension_numbers = #tpu.dot_dimension_numbers<[1], [0], [0], [1], [0, 0, 1, 1], [], []>} : vector<8x128xbf16>, vector<128x512xbf16>, vector<8x512xf32> -> vector<8x512xf32>
      %17 = arith.addf %12, %16 : vector<8x512xf32>
      %c0_18 = arith.constant 0 : index
      %c0_19 = arith.constant 0 : index
      %18 = vector.load %arg4[%c0_18, %c0_19] : memref<1x512xf32, #tpu.memory_space<vmem>>, vector<1x512xf32>
      %19 = vector.broadcast %18 : vector<1x512xf32> to vector<8x512xf32>
      %20 = arith.addf %17, %19 : vector<8x512xf32>
      %21 = vector.extract_strided_slice %20 {offsets = [0, 0], sizes = [8, 128], strides = [1, 1]} : vector<8x512xf32> to vector<8x128xf32>
      %22 = arith.negf %21 : vector<8x128xf32>
      %23 = math.exp %22 : vector<8x128xf32>
      %cst_20 = arith.constant 1.000000e+00 : f32
      %24 = vector.broadcast %cst_20 : f32 to vector<8x128xf32>
      %25 = arith.addf %24, %23 : vector<8x128xf32>
      %26 = arith.divf %24, %25 : vector<8x128xf32>
      %27 = vector.extract_strided_slice %20 {offsets = [0, 128], sizes = [8, 128], strides = [1, 1]} : vector<8x512xf32> to vector<8x128xf32>
      %28 = arith.negf %27 : vector<8x128xf32>
      %29 = math.exp %28 : vector<8x128xf32>
      %cst_21 = arith.constant 1.000000e+00 : f32
      %30 = vector.broadcast %cst_21 : f32 to vector<8x128xf32>
      %31 = arith.addf %30, %29 : vector<8x128xf32>
      %32 = arith.divf %30, %31 : vector<8x128xf32>
      %33 = vector.extract_strided_slice %20 {offsets = [0, 256], sizes = [8, 128], strides = [1, 1]} : vector<8x512xf32> to vector<8x128xf32>
      %34 = math.tanh %33 : vector<8x128xf32>
      %35 = vector.extract_strided_slice %20 {offsets = [0, 384], sizes = [8, 128], strides = [1, 1]} : vector<8x512xf32> to vector<8x128xf32>
      %36 = arith.negf %35 : vector<8x128xf32>
      %37 = math.exp %36 : vector<8x128xf32>
      %cst_22 = arith.constant 1.000000e+00 : f32
      %38 = vector.broadcast %cst_22 : f32 to vector<8x128xf32>
      %39 = arith.addf %38, %37 : vector<8x128xf32>
      %40 = arith.divf %38, %39 : vector<8x128xf32>
      %c0_23 = arith.constant 0 : index
      %c0_24 = arith.constant 0 : index
      %41 = vector.load %arg6[%c0_23, %c0_24] : memref<8x128xf32, #tpu.memory_space<vmem>>, vector<8x128xf32>
      %42 = arith.mulf %32, %41 : vector<8x128xf32>
      %43 = arith.mulf %26, %34 : vector<8x128xf32>
      %44 = arith.addf %42, %43 : vector<8x128xf32>
      %45 = math.tanh %44 : vector<8x128xf32>
      %46 = arith.mulf %40, %45 : vector<8x128xf32>
      %c0_25 = arith.constant 0 : index
      %c0_26 = arith.constant 0 : index
      %47 = vector.load %arg11[%c0_25, %c0_26] : memref<8x128xf32, #tpu.memory_space<vmem>>, vector<8x128xf32>
      tpu.vector_store %arg11[%c0_25, %c0_26], %44 {strides = array<i32>} : memref<8x128xf32, #tpu.memory_space<vmem>>, vector<8x128xf32>,
      %c0_27 = arith.constant 0 : index
      %c0_28 = arith.constant 0 : index
      %48 = vector.load %arg10[%c0_27, %c0_28] : memref<8x128xf32, #tpu.memory_space<vmem>>, vector<8x128xf32>
      tpu.vector_store %arg10[%c0_27, %c0_28], %46 {strides = array<i32>} : memref<8x128xf32, #tpu.memory_space<vmem>>, vector<8x128xf32>,
      %49 = arith.truncf %46 : vector<8x128xf32> to vector<8x128xbf16>
      %c0_29 = arith.constant 0 : index
      %c0_30 = arith.constant 0 : index
      %50 = vector.load %arg12[%c0_29, %c0_30] : memref<8x128xbf16, #tpu.memory_space<vmem>>, vector<8x128xbf16>
      tpu.vector_store %arg12[%c0_29, %c0_30], %49 {strides = array<i32>} : memref<8x128xbf16, #tpu.memory_space<vmem>>, vector<8x128xbf16>,
    } else {
    }
    %c0 = arith.constant 0 : index
    %c0_1 = arith.constant 0 : index
    %3 = vector.load %arg12[%c0, %c0_1] : memref<8x128xbf16, #tpu.memory_space<vmem>>, vector<8x128xbf16>
    %c0_2 = arith.constant 0 : index
    %c0_3 = arith.constant 0 : index
    %4 = vector.load %arg7[%c0_2, %c0_3] : memref<128x128xbf16, #tpu.memory_space<vmem>>, vector<128x128xbf16>
    %cst = arith.constant dense<0.000000e+00> : vector<8x128xf32>
    %5 = tpu.matmul %3, %4, %cst {dimension_numbers = #tpu.dot_dimension_numbers<[1], [0], [0], [1], [0, 0, 1, 1], [], []>} : vector<8x128xbf16>, vector<128x128xbf16>, vector<8x128xf32> -> vector<8x128xf32>
    %c0_4 = arith.constant 0 : index
    %c0_5 = arith.constant 0 : index
    %6 = vector.load %arg8[%c0_4, %c0_5] : memref<1x128xf32, #tpu.memory_space<vmem>>, vector<1x128xf32>
    %7 = vector.broadcast %6 : vector<1x128xf32> to vector<8x128xf32>
    %8 = arith.addf %5, %7 : vector<8x128xf32>
    %c0_6 = arith.constant 0 : index
    %c0_7 = arith.constant 0 : index
    %9 = vector.load %arg9[%c0_6, %c0_7] : memref<8x128xf32, #tpu.memory_space<vmem>>, vector<8x128xf32>
    tpu.vector_store %arg9[%c0_6, %c0_7], %8 {strides = array<i32>} : memref<8x128xf32, #tpu.memory_space<vmem>>, vector<8x128xf32>,
    return
  }
  func.func @transform_0(%arg0: i32) -> (i32, i32) {
    %c0_i32 = arith.constant 0 : i32
    %c0_i32_0 = arith.constant 0 : i32
    %c0_i32_1 = arith.constant 0 : i32
    return %c0_i32, %c0_i32_0 : i32, i32
  }
  func.func @transform_1(%arg0: i32) -> (i32, i32) {
    %c0_i32 = arith.constant 0 : i32
    %c0_i32_0 = arith.constant 0 : i32
    %c0_i32_1 = arith.constant 0 : i32
    return %c0_i32, %c0_i32_0 : i32, i32
  }
  func.func @transform_2(%arg0: i32) -> (i32, i32) {
    %c0_i32 = arith.constant 0 : i32
    %c0_i32_0 = arith.constant 0 : i32
    %c0_i32_1 = arith.constant 0 : i32
    return %c0_i32, %c0_i32_0 : i32, i32
  }
  func.func @transform_3(%arg0: i32) -> (i32, i32) {
    %c0_i32 = arith.constant 0 : i32
    %c0_i32_0 = arith.constant 0 : i32
    %c0_i32_1 = arith.constant 0 : i32
    return %c0_i32, %c0_i32_0 : i32, i32
  }
  func.func @transform_4(%arg0: i32) -> (i32, i32) {
    %c0_i32 = arith.constant 0 : i32
    %c0_i32_0 = arith.constant 0 : i32
    %c0_i32_1 = arith.constant 0 : i32
    return %c0_i32, %c0_i32_0 : i32, i32
  }
  func.func @transform_5(%arg0: i32) -> (i32, i32) {
    %c0_i32 = arith.constant 0 : i32
    %c0_i32_0 = arith.constant 0 : i32
    %c0_i32_1 = arith.constant 0 : i32
    return %c0_i32, %c0_i32_0 : i32, i32
  }
  func.func @transform_6(%arg0: i32) -> (i32, i32) {
    %c0_i32 = arith.constant 0 : i32
    %c0_i32_0 = arith.constant 0 : i32
    return %c0_i32, %arg0 : i32, i32
  }
  func.func @transform_7(%arg0: i32) -> (i32, i32) {
    %c0_i32 = arith.constant 0 : i32
    %c0_i32_0 = arith.constant 0 : i32
    return %c0_i32, %arg0 : i32, i32
  }
  func.func @transform_8(%arg0: i32) -> (i32, i32) {
    %c0_i32 = arith.constant 0 : i32
    %c0_i32_0 = arith.constant 0 : i32
    return %c0_i32, %arg0 : i32, i32
  }
  func.func @transform_9(%arg0: i32) -> (i32, i32) {
    %c0_i32 = arith.constant 0 : i32
    %c0_i32_0 = arith.constant 0 : i32
    %c0_i32_1 = arith.constant 0 : i32
    return %c0_i32, %c0_i32_0 : i32, i32
  }
  func.func @transform_10(%arg0: i32) -> (i32, i32) {
    %c0_i32 = arith.constant 0 : i32
    %c0_i32_0 = arith.constant 0 : i32
    %c0_i32_1 = arith.constant 0 : i32
    return %c0_i32, %c0_i32_0 : i32, i32
  }
}

</mosaic_0001>

<llo_original>
// kernel: decoder_forward.1
$region0: #{decoder_forward.1}
  #allocation0 [shape = 'u32[]', space=smem, size = 0x4, offset = 0x4, fixed_abs, tag = 'smem constant byte address 0x4 - core index']
  #allocation1 [shape = 'u32[144,128]{1,0:T(1,128)}', space=vmem, size = 0x12000, scoped, tag = 'internal scratch']
  #allocation2 [shape = 'bf16[8,128]{1,0:T(8,128)(2,1)}', space=vmem, size = 0x800, scoped, tag = 'scratch operand']
  %s0 = inlined_call_operand.vmem [shape: bf16[8,128], index: 0, kind: input, shape index: {}]
  %s1 = inlined_call_operand.hbm [shape: bf16[128,512], index: 1, kind: input, shape index: {}]
  %s2 = inlined_call_operand.hbm [shape: bf16[128,512], index: 2, kind: input, shape index: {}]
  %s3 = inlined_call_operand.vmem [shape: f32[1,512], index: 3, kind: input, shape index: {}]
  %s4 = inlined_call_operand.vmem [shape: f32[8,128], index: 4, kind: input, shape index: {}, may-alias: {4,9}]
  %s5 = inlined_call_operand.vmem [shape: f32[8,128], index: 5, kind: input, shape index: {}, may-alias: {5,10}]
  %s6 = inlined_call_operand.hbm [shape: bf16[128,128], index: 6, kind: input, shape index: {}]
  %s7 = inlined_call_operand.vmem [shape: f32[1,128], index: 7, kind: input, shape index: {}]
  %s8 = inlined_call_operand.vmem [shape: f32[8,128], index: 8, kind: output, shape index: {0}]
  %s9 = inlined_call_operand.vmem [shape: f32[8,128], index: 9, kind: output, shape index: {1}, may-alias: {4,9}]
  %s10 = inlined_call_operand.vmem [shape: f32[8,128], index: 10, kind: output, shape index: {2}, may-alias: {5,10}]
  %11 = xla_tuple %s8, %s9, %s10
  %s12 = sld [smem:[#allocation0]]
  $region74: #{decoder_forward.1} parent=0
    _
  %s14 = ssub.s32 1, %s12
  %s15 = scalar_select 0, %s14, %s12
  $region1: #{decoder_forward.1} parent=0
    #allocation3 [shape = 'u8[131072]{0}', space=vmem, size = 0x20000, scoped, tag = 'input window, operand 1, single buffered']
    #allocation4 [shape = 's32[1]{0}', space=sflag, size = 0x4, scoped, tag = 'scoped memory for decoder_forward.1']
    #allocation5 [shape = 'u8[131072]{0}', space=vmem, size = 0x20000, scoped, tag = 'input window, operand 2, single buffered']
    #allocation6 [shape = 's32[1]{0}', space=sflag, size = 0x4, scoped, tag = 'scoped memory for decoder_forward.1']
    #allocation7 [shape = 'u8[32768]{0}', space=vmem, size = 0x8000, scoped, tag = 'input window, operand 6, single buffered']
    %16 = vsyncpa [#allocation4], 0
    %17 = vsyncpa [#allocation6], 0
    // Predicated region
    $region2: #{decoder_forward.1} parent=1 // pred_check
      _
    $region3: #{decoder_forward.1} parent=1 // pred_check_branch
      %19 = sbr.rel (0) target = $region5
    $region4: #{decoder_forward.1} parent=1 // pred_region
      _
    $region5: #{decoder_forward.1} parent=1 // pred_fallthru
      _
    // Predicated region
    $region6: #{decoder_forward.1} parent=1 // pred_check
      _
    $region7: #{decoder_forward.1} parent=1 // pred_check_branch
      %21 = sbr.rel (0) target = $region9
    $region8: #{decoder_forward.1} parent=1 // pred_region
      %s23 = ssub.s32 4096, 4096
      %24 = vsyncadd [#allocation4], %s23
      %s25 = sshll.u32 [#allocation3], 4
      %s26 = int_to_ptr.vmem [resolvable:$true] %s25
      %31 = dma.hbm_to_vmem [thread:$0]  %s1, 4096, %s26, [#allocation4], 256, 256, 16
    $region9: #{decoder_forward.1} parent=1 // pred_fallthru
      _
    // Predicated region
    $region10: #{decoder_forward.1} parent=1 // pred_check
      _
    $region11: #{decoder_forward.1} parent=1 // pred_check_branch
      %33 = sbr.rel (0) target = $region13
    $region12: #{decoder_forward.1} parent=1 // pred_region
      %s35 = ssub.s32 4096, 4096
      %36 = vsyncadd [#allocation6], %s35
      %s37 = sshll.u32 [#allocation5], 4
      %s38 = int_to_ptr.vmem [resolvable:$true] %s37
      %43 = dma.hbm_to_vmem [thread:$0]  %s2, 4096, %s38, [#allocation6], 256, 256, 16
    $region13: #{decoder_forward.1} parent=1 // pred_fallthru
      _
    // Predicated region
    $region14: #{decoder_forward.1} parent=1 // pred_check
      _
    $region15: #{decoder_forward.1} parent=1 // pred_check_branch
      %45 = sbr.rel (0) target = $region17
    $region16: #{decoder_forward.1} parent=1 // pred_region
      _
    $region17: #{decoder_forward.1} parent=1 // pred_fallthru
      _
    // Predicated region
    $region18: #{decoder_forward.1} parent=1 // pred_check
      _
    $region19: #{decoder_forward.1} parent=1 // pred_check_branch
      %47 = sbr.rel (0) target = $region21
    $region20: #{decoder_forward.1} parent=1 // pred_region
      _
    $region21: #{decoder_forward.1} parent=1 // pred_fallthru
      _
    // Predicated region
    $region22: #{decoder_forward.1} parent=1 // pred_check
      _
    $region23: #{decoder_forward.1} parent=1 // pred_check_branch
      %49 = sbr.rel (0) target = $region25
    $region24: #{decoder_forward.1} parent=1 // pred_region
      _
    $region25: #{decoder_forward.1} parent=1 // pred_fallthru
      _
    // Predicated region
    $region26: #{decoder_forward.1} parent=1 // pred_check
      _
    $region27: #{decoder_forward.1} parent=1 // pred_check_branch
      %51 = sbr.rel (0) target = $region29
    $region28: #{decoder_forward.1} parent=1 // pred_region
      %s53 = ssub.s32 1024, 1024
      %54 = vsyncadd [#allocation6], %s53
      %s55 = sshll.u32 [#allocation7], 4
      %s56 = int_to_ptr.vmem [resolvable:$true] %s55
      %61 = dma.hbm_to_vmem [thread:$0]  %s6, 1024, %s56, [#allocation6], 64, 64, 4
    $region29: #{decoder_forward.1} parent=1 // pred_fallthru
      _
    // Predicated region
    $region30: #{decoder_forward.1} parent=1 // pred_check
      _
    $region31: #{decoder_forward.1} parent=1 // pred_check_branch
      %63 = sbr.rel (0) target = $region33
    $region32: #{decoder_forward.1} parent=1 // pred_region
      _
    $region33: #{decoder_forward.1} parent=1 // pred_fallthru
      _
    // Predicated region
    $region34: #{decoder_forward.1} parent=1 // pred_check
      _
    $region35: #{decoder_forward.1} parent=1 // pred_check_branch
      %65 = sbr.rel (0) target = $region37
    $region36: #{decoder_forward.1} parent=1 // pred_region
      %66 = dma.done [#allocation4], 4096
    $region37: #{decoder_forward.1} parent=1 // pred_fallthru
      _
    // Predicated region
    $region38: #{decoder_forward.1} parent=1 // pred_check
      _
    $region39: #{decoder_forward.1} parent=1 // pred_check_branch
      %68 = sbr.rel (0) target = $region41
    $region40: #{decoder_forward.1} parent=1 // pred_region
      %69 = dma.done [#allocation6], 4096
    $region41: #{decoder_forward.1} parent=1 // pred_fallthru
      _
    // Predicated region
    $region42: #{decoder_forward.1} parent=1 // pred_check
      _
    $region43: #{decoder_forward.1} parent=1 // pred_check_branch
      %71 = sbr.rel (0) target = $region45
    $region44: #{decoder_forward.1} parent=1 // pred_region
      %72 = dma.done [#allocation6], 1024
    $region45: #{decoder_forward.1} parent=1 // pred_fallthru
      _
    %p74 = scmp.eq.s32.totalorder 0, 0
    // Predicated region
    $region46: #{decoder_forward.1} parent=1 // pred_check
      %p75 = pneg %p74
    $region47: #{decoder_forward.1} parent=1 // pred_check_branch
      %77 = sbr.rel (%p75) target = $region49
    $region48: #{decoder_forward.1} parent=1 // pred_region
      %v78 = vld [vmem:[%s0] sm:$0xf]
      %v79 = vld [vmem:[#allocation3] sm:$0xff]
      %v80 = vld [vmem:[#allocation3 + $0x8] sm:$0xff]
      %v81 = vld [vmem:[#allocation3 + $0x10] sm:$0xff]
      %v82 = vld [vmem:[#allocation3 + $0x18] sm:$0xff]
      %v83 = vld [vmem:[#allocation3 + $0x20] sm:$0xff]
      %v84 = vld [vmem:[#allocation3 + $0x28] sm:$0xff]
      %v85 = vld [vmem:[#allocation3 + $0x30] sm:$0xff]
      %v86 = vld [vmem:[#allocation3 + $0x38] sm:$0xff]
      %v87 = vld [vmem:[#allocation3 + $0x40] sm:$0xff]
      %v88 = vld [vmem:[#allocation3 + $0x48] sm:$0xff]
      %v89 = vld [vmem:[#allocation3 + $0x50] sm:$0xff]
      %v90 = vld [vmem:[#allocation3 + $0x58] sm:$0xff]
      %v91 = vld [vmem:[#allocation3 + $0x60] sm:$0xff]
      %v92 = vld [vmem:[#allocation3 + $0x68] sm:$0xff]
      %v93 = vld [vmem:[#allocation3 + $0x70] sm:$0xff]
      %v94 = vld [vmem:[#allocation3 + $0x78] sm:$0xff]
      %v95 = vld [vmem:[#allocation3 + $0x80] sm:$0xff]
      %v96 = vld [vmem:[#allocation3 + $0x88] sm:$0xff]
      %v97 = vld [vmem:[#allocation3 + $0x90] sm:$0xff]
      %v98 = vld [vmem:[#allocation3 + $0x98] sm:$0xff]
      %v99 = vld [vmem:[#allocation3 + $0xa0] sm:$0xff]
      %v100 = vld [vmem:[#allocation3 + $0xa8] sm:$0xff]
      %v101 = vld [vmem:[#allocation3 + $0xb0] sm:$0xff]
      %v102 = vld [vmem:[#allocation3 + $0xb8] sm:$0xff]
      %v103 = vld [vmem:[#allocation3 + $0xc0] sm:$0xff]
      %v104 = vld [vmem:[#allocation3 + $0xc8] sm:$0xff]
      %v105 = vld [vmem:[#allocation3 + $0xd0] sm:$0xff]
      %v106 = vld [vmem:[#allocation3 + $0xd8] sm:$0xff]
      %v107 = vld [vmem:[#allocation3 + $0xe0] sm:$0xff]
      %v108 = vld [vmem:[#allocation3 + $0xe8] sm:$0xff]
      %v109 = vld [vmem:[#allocation3 + $0xf0] sm:$0xff]
      %v110 = vld [vmem:[#allocation3 + $0xf8] sm:$0xff]
      %v111 = vld [vmem:[%s4] sm:$0xff]
      %v112 = vpack.c.bf16 %v111, %v111
      %v113 = vld [vmem:[#allocation5] sm:$0xff]
      %v114 = vld [vmem:[#allocation5 + $0x8] sm:$0xff]
      %v115 = vld [vmem:[#allocation5 + $0x10] sm:$0xff]
      %v116 = vld [vmem:[#allocation5 + $0x18] sm:$0xff]
      %v117 = vld [vmem:[#allocation5 + $0x20] sm:$0xff]
      %v118 = vld [vmem:[#allocation5 + $0x28] sm:$0xff]
      %v119 = vld [vmem:[#allocation5 + $0x30] sm:$0xff]
      %v120 = vld [vmem:[#allocation5 + $0x38] sm:$0xff]
      %v121 = vld [vmem:[#allocation5 + $0x40] sm:$0xff]
      %v122 = vld [vmem:[#allocation5 + $0x48] sm:$0xff]
      %v123 = vld [vmem:[#allocation5 + $0x50] sm:$0xff]
      %v124 = vld [vmem:[#allocation5 + $0x58] sm:$0xff]
      %v125 = vld [vmem:[#allocation5 + $0x60] sm:$0xff]
      %v126 = vld [vmem:[#allocation5 + $0x68] sm:$0xff]
      %v127 = vld [vmem:[#allocation5 + $0x70] sm:$0xff]
      %v128 = vld [vmem:[#allocation5 + $0x78] sm:$0xff]
      %v129 = vld [vmem:[#allocation5 + $0x80] sm:$0xff]
      %v130 = vld [vmem:[#allocation5 + $0x88] sm:$0xff]
      %v131 = vld [vmem:[#allocation5 + $0x90] sm:$0xff]
      %v132 = vld [vmem:[#allocation5 + $0x98] sm:$0xff]
      %v133 = vld [vmem:[#allocation5 + $0xa0] sm:$0xff]
      %v134 = vld [vmem:[#allocation5 + $0xa8] sm:$0xff]
      %v135 = vld [vmem:[#allocation5 + $0xb0] sm:$0xff]
      %v136 = vld [vmem:[#allocation5 + $0xb8] sm:$0xff]
      %v137 = vld [vmem:[#allocation5 + $0xc0] sm:$0xff]
      %v138 = vld [vmem:[#allocation5 + $0xc8] sm:$0xff]
      %v139 = vld [vmem:[#allocation5 + $0xd0] sm:$0xff]
      %v140 = vld [vmem:[#allocation5 + $0xd8] sm:$0xff]
      %v141 = vld [vmem:[#allocation5 + $0xe0] sm:$0xff]
      %v142 = vld [vmem:[#allocation5 + $0xe8] sm:$0xff]
      %v143 = vld [vmem:[#allocation5 + $0xf0] sm:$0xff]
      %v144 = vld [vmem:[#allocation5 + $0xf8] sm:$0xff]
      %v177 = vunpack.c.l.b16 %v113
      %v178 = vunpack.c.h.b16 %v113
      %v179 = vunpack.c.l.b16 %v114
      %v180 = vunpack.c.h.b16 %v114
      %v181 = vunpack.c.l.b16 %v115
      %v182 = vunpack.c.h.b16 %v115
      %v183 = vunpack.c.l.b16 %v116
      %v184 = vunpack.c.h.b16 %v116
      %v185 = vunpack.c.l.b16 %v117
      %v186 = vunpack.c.h.b16 %v117
      %v187 = vunpack.c.l.b16 %v118
      %v188 = vunpack.c.h.b16 %v118
      %v189 = vunpack.c.l.b16 %v119
      %v190 = vunpack.c.h.b16 %v119
      %v191 = vunpack.c.l.b16 %v120
      %v192 = vunpack.c.h.b16 %v120
      %v193 = vunpack.c.l.b16 %v121
      %v194 = vunpack.c.h.b16 %v121
      %v195 = vunpack.c.l.b16 %v122
      %v196 = vunpack.c.h.b16 %v122
      %v197 = vunpack.c.l.b16 %v123
      %v198 = vunpack.c.h.b16 %v123
      %v199 = vunpack.c.l.b16 %v124
      %v200 = vunpack.c.h.b16 %v124
      %v201 = vunpack.c.l.b16 %v125
      %v202 = vunpack.c.h.b16 %v125
      %v203 = vunpack.c.l.b16 %v126
      %v204 = vunpack.c.h.b16 %v126
      %v205 = vunpack.c.l.b16 %v127
      %v206 = vunpack.c.h.b16 %v127
      %v207 = vunpack.c.l.b16 %v128
      %v208 = vunpack.c.h.b16 %v128
      %v209 = vunpack.c.l.b16 %v129
      %v210 = vunpack.c.h.b16 %v129
      %v211 = vunpack.c.l.b16 %v130
      %v212 = vunpack.c.h.b16 %v130
      %v213 = vunpack.c.l.b16 %v131
      %v214 = vunpack.c.h.b16 %v131
      %v215 = vunpack.c.l.b16 %v132
      %v216 = vunpack.c.h.b16 %v132
      %v217 = vunpack.c.l.b16 %v133
      %v218 = vunpack.c.h.b16 %v133
      %v219 = vunpack.c.l.b16 %v134
      %v220 = vunpack.c.h.b16 %v134
      %v221 = vunpack.c.l.b16 %v135
      %v222 = vunpack.c.h.b16 %v135
      %v223 = vunpack.c.l.b16 %v136
      %v224 = vunpack.c.h.b16 %v136
      %v225 = vunpack.c.l.b16 %v137
      %v226 = vunpack.c.h.b16 %v137
      %v227 = vunpack.c.l.b16 %v138
      %v228 = vunpack.c.h.b16 %v138
      %v229 = vunpack.c.l.b16 %v139
      %v230 = vunpack.c.h.b16 %v139
      %v231 = vunpack.c.l.b16 %v140
      %v232 = vunpack.c.h.b16 %v140
      %v233 = vunpack.c.l.b16 %v141
      %v234 = vunpack.c.h.b16 %v141
      %v235 = vunpack.c.l.b16 %v142
      %v236 = vunpack.c.h.b16 %v142
      %v237 = vunpack.c.l.b16 %v143
      %v238 = vunpack.c.h.b16 %v143
      %v239 = vunpack.c.l.b16 %v144
      %v240 = vunpack.c.h.b16 %v144
      %v241 = vpack.c.b16 %v181, %v177
      %v242 = vpack.c.b16 %v182, %v178
      %v243 = vpack.c.b16 %v183, %v179
      %v244 = vpack.c.b16 %v184, %v180
      %v245 = vpack.c.b16 %v189, %v185
      %v246 = vpack.c.b16 %v190, %v186
      %v247 = vpack.c.b16 %v191, %v187
      %v248 = vpack.c.b16 %v192, %v188
      %v249 = vpack.c.b16 %v197, %v193
      %v250 = vpack.c.b16 %v198, %v194
      %v251 = vpack.c.b16 %v199, %v195
      %v252 = vpack.c.b16 %v200, %v196
      %v253 = vpack.c.b16 %v205, %v201
      %v254 = vpack.c.b16 %v206, %v202
      %v255 = vpack.c.b16 %v207, %v203
      %v256 = vpack.c.b16 %v208, %v204
      %v257 = vpack.c.b16 %v213, %v209
      %v258 = vpack.c.b16 %v214, %v210
      %v259 = vpack.c.b16 %v215, %v211
      %v260 = vpack.c.b16 %v216, %v212
      %v261 = vpack.c.b16 %v221, %v217
      %v262 = vpack.c.b16 %v222, %v218
      %v263 = vpack.c.b16 %v223, %v219
      %v264 = vpack.c.b16 %v224, %v220
      %v265 = vpack.c.b16 %v229, %v225
      %v266 = vpack.c.b16 %v230, %v226
      %v267 = vpack.c.b16 %v231, %v227
      %v268 = vpack.c.b16 %v232, %v228
      %v269 = vpack.c.b16 %v237, %v233
      %v270 = vpack.c.b16 %v238, %v234
      %v271 = vpack.c.b16 %v239, %v235
      %v272 = vpack.c.b16 %v240, %v236
      %305 = vmatprep.subr.bf16.mxu0 %v270
      %306 = vmatpush1.bf16.msra.mxu0 %v269
      %307 = vmatprep.subr.bf16.mxu0 %v266
      %308 = vmatpush1.bf16.msra.mxu0 %v265
      %309 = vmatprep.subr.bf16.mxu0 %v262
      %310 = vmatpush1.bf16.msra.mxu0 %v261
      %311 = vmatprep.subr.bf16.mxu0 %v258
      %312 = vmatpush1.bf16.msra.mxu0 %v257
      %313 = vmatprep.subr.bf16.mxu0 %v254
      %314 = vmatpush1.bf16.msra.mxu0 %v253
      %315 = vmatprep.subr.bf16.mxu0 %v250
      %316 = vmatpush1.bf16.msra.mxu0 %v249
      %317 = vmatprep.subr.bf16.mxu0 %v246
      %318 = vmatpush1.bf16.msra.mxu0 %v245
      %319 = vmatprep.subr.bf16.mxu0 %v242
      %320 = vmatpush1.bf16.msra.mxu0 %v241
      %321 = vmatprep.subr.bf16.mxu0 0
      %322 = vmatpush2.bf16.msra.mxu0 0
      %323 = vmatprep.subr.bf16.mxu0 0
      %324 = vmatpush2.bf16.msra.mxu0 0
      %325 = vmatprep.subr.bf16.mxu0 0
      %326 = vmatpush2.bf16.msra.mxu0 0
      %327 = vmatprep.subr.bf16.mxu0 0
      %328 = vmatpush2.bf16.msra.mxu0 0
      %329 = vmatprep.subr.bf16.mxu0 0
      %330 = vmatpush2.bf16.msra.mxu0 0
      %331 = vmatprep.subr.bf16.mxu0 0
      %332 = vmatpush2.bf16.msra.mxu0 0
      %333 = vmatprep.subr.bf16.mxu0 0
      %334 = vmatpush2.bf16.msra.mxu0 0
      %335 = vmatprep.subr.bf16.mxu0 0
      %336 = vmatpush2.bf16.msra.mxu0 0
      %337 = vmatprep.mubr.bf16.mxu0 0
      %338 = vmatmul.mubr.bf16.gmra.mxu0 %v112
      %v339 = vpop.f32.mrf.mxu0
      %v340 = vadd.f32 0.0, %v339
      %v341 = vpop.f32.mrf.mxu0
      %v342 = vadd.f32 0.0, %v341
      %v343 = vpop.f32.mrf.mxu0
      %v344 = vpop.f32.mrf.mxu0
      %345 = vdwg.mxu0
      %346 = vmatprep.subr.bf16.mxu0 %v272
      %347 = vmatpush1.bf16.msra.mxu0 %v271
      %348 = vmatprep.subr.bf16.mxu0 %v268
      %349 = vmatpush1.bf16.msra.mxu0 %v267
      %350 = vmatprep.subr.bf16.mxu0 %v264
      %351 = vmatpush1.bf16.msra.mxu0 %v263
      %352 = vmatprep.subr.bf16.mxu0 %v260
      %353 = vmatpush1.bf16.msra.mxu0 %v259
      %354 = vmatprep.subr.bf16.mxu0 %v256
      %355 = vmatpush1.bf16.msra.mxu0 %v255
      %356 = vmatprep.subr.bf16.mxu0 %v252
      %357 = vmatpush1.bf16.msra.mxu0 %v251
      %358 = vmatprep.subr.bf16.mxu0 %v248
      %359 = vmatpush1.bf16.msra.mxu0 %v247
      %360 = vmatprep.subr.bf16.mxu0 %v244
      %361 = vmatpush1.bf16.msra.mxu0 %v243
      %362 = vmatprep.subr.bf16.mxu0 0
      %363 = vmatpush2.bf16.msra.mxu0 0
      %364 = vmatprep.subr.bf16.mxu0 0
      %365 = vmatpush2.bf16.msra.mxu0 0
      %366 = vmatprep.subr.bf16.mxu0 0
      %367 = vmatpush2.bf16.msra.mxu0 0
      %368 = vmatprep.subr.bf16.mxu0 0
      %369 = vmatpush2.bf16.msra.mxu0 0
      %370 = vmatprep.subr.bf16.mxu0 0
      %371 = vmatpush2.bf16.msra.mxu0 0
      %372 = vmatprep.subr.bf16.mxu0 0
      %373 = vmatpush2.bf16.msra.mxu0 0
      %374 = vmatprep.subr.bf16.mxu0 0
      %375 = vmatpush2.bf16.msra.mxu0 0
      %376 = vmatprep.subr.bf16.mxu0 0
      %377 = vmatpush2.bf16.msra.mxu0 0
      %378 = vmatprep.mubr.bf16.mxu0 0
      %379 = vmatmul.mubr.bf16.gmra.mxu0 %v112
      %v380 = vpop.f32.mrf.mxu0
      %v381 = vadd.f32 0.0, %v380
      %v382 = vpop.f32.mrf.mxu0
      %v383 = vadd.f32 0.0, %v382
      %v384 = vpop.f32.mrf.mxu0
      %v385 = vpop.f32.mrf.mxu0
      %386 = vdwg.mxu0
      %v419 = vunpack.c.l.b16 %v79
      %v420 = vunpack.c.h.b16 %v79
      %v421 = vunpack.c.l.b16 %v80
      %v422 = vunpack.c.h.b16 %v80
      %v423 = vunpack.c.l.b16 %v81
      %v424 = vunpack.c.h.b16 %v81
      %v425 = vunpack.c.l.b16 %v82
      %v426 = vunpack.c.h.b16 %v82
      %v427 = vunpack.c.l.b16 %v83
      %v428 = vunpack.c.h.b16 %v83
      %v429 = vunpack.c.l.b16 %v84
      %v430 = vunpack.c.h.b16 %v84
      %v431 = vunpack.c.l.b16 %v85
      %v432 = vunpack.c.h.b16 %v85
      %v433 = vunpack.c.l.b16 %v86
      %v434 = vunpack.c.h.b16 %v86
      %v435 = vunpack.c.l.b16 %v87
      %v436 = vunpack.c.h.b16 %v87
      %v437 = vunpack.c.l.b16 %v88
      %v438 = vunpack.c.h.b16 %v88
      %v439 = vunpack.c.l.b16 %v89
      %v440 = vunpack.c.h.b16 %v89
      %v441 = vunpack.c.l.b16 %v90
      %v442 = vunpack.c.h.b16 %v90
      %v443 = vunpack.c.l.b16 %v91
      %v444 = vunpack.c.h.b16 %v91
      %v445 = vunpack.c.l.b16 %v92
      %v446 = vunpack.c.h.b16 %v92
      %v447 = vunpack.c.l.b16 %v93
      %v448 = vunpack.c.h.b16 %v93
      %v449 = vunpack.c.l.b16 %v94
      %v450 = vunpack.c.h.b16 %v94
      %v451 = vunpack.c.l.b16 %v95
      %v452 = vunpack.c.h.b16 %v95
      %v453 = vunpack.c.l.b16 %v96
      %v454 = vunpack.c.h.b16 %v96
      %v455 = vunpack.c.l.b16 %v97
      %v456 = vunpack.c.h.b16 %v97
      %v457 = vunpack.c.l.b16 %v98
      %v458 = vunpack.c.h.b16 %v98
      %v459 = vunpack.c.l.b16 %v99
      %v460 = vunpack.c.h.b16 %v99
      %v461 = vunpack.c.l.b16 %v100
      %v462 = vunpack.c.h.b16 %v100
      %v463 = vunpack.c.l.b16 %v101
      %v464 = vunpack.c.h.b16 %v101
      %v465 = vunpack.c.l.b16 %v102
      %v466 = vunpack.c.h.b16 %v102
      %v467 = vunpack.c.l.b16 %v103
      %v468 = vunpack.c.h.b16 %v103
      %v469 = vunpack.c.l.b16 %v104
      %v470 = vunpack.c.h.b16 %v104
      %v471 = vunpack.c.l.b16 %v105
      %v472 = vunpack.c.h.b16 %v105
      %v473 = vunpack.c.l.b16 %v106
      %v474 = vunpack.c.h.b16 %v106
      %v475 = vunpack.c.l.b16 %v107
      %v476 = vunpack.c.h.b16 %v107
      %v477 = vunpack.c.l.b16 %v108
      %v478 = vunpack.c.h.b16 %v108
      %v479 = vunpack.c.l.b16 %v109
      %v480 = vunpack.c.h.b16 %v109
      %v481 = vunpack.c.l.b16 %v110
      %v482 = vunpack.c.h.b16 %v110
      %v483 = vpack.c.b16 %v423, %v419
      %v484 = vpack.c.b16 %v424, %v420
      %v485 = vpack.c.b16 %v425, %v421
      %v486 = vpack.c.b16 %v426, %v422
      %v487 = vpack.c.b16 %v431, %v427
      %v488 = vpack.c.b16 %v432, %v428
      %v489 = vpack.c.b16 %v433, %v429
      %v490 = vpack.c.b16 %v434, %v430
      %v491 = vpack.c.b16 %v439, %v435
      %v492 = vpack.c.b16 %v440, %v436
      %v493 = vpack.c.b16 %v441, %v437
      %v494 = vpack.c.b16 %v442, %v438
      %v495 = vpack.c.b16 %v447, %v443
      %v496 = vpack.c.b16 %v448, %v444
      %v497 = vpack.c.b16 %v449, %v445
      %v498 = vpack.c.b16 %v450, %v446
      %v499 = vpack.c.b16 %v455, %v451
      %v500 = vpack.c.b16 %v456, %v452
      %v501 = vpack.c.b16 %v457, %v453
      %v502 = vpack.c.b16 %v458, %v454
      %v503 = vpack.c.b16 %v463, %v459
      %v504 = vpack.c.b16 %v464, %v460
      %v505 = vpack.c.b16 %v465, %v461
      %v506 = vpack.c.b16 %v466, %v462
      %v507 = vpack.c.b16 %v471, %v467
      %v508 = vpack.c.b16 %v472, %v468
      %v509 = vpack.c.b16 %v473, %v469
      %v510 = vpack.c.b16 %v474, %v470
      %v511 = vpack.c.b16 %v479, %v475
      %v512 = vpack.c.b16 %v480, %v476
      %v513 = vpack.c.b16 %v481, %v477
      %v514 = vpack.c.b16 %v482, %v478
      %547 = vmatprep.subr.bf16.mxu0 %v512
      %548 = vmatpush1.bf16.msra.mxu0 %v511
      %549 = vmatprep.subr.bf16.mxu0 %v508
      %550 = vmatpush1.bf16.msra.mxu0 %v507
      %551 = vmatprep.subr.bf16.mxu0 %v504
      %552 = vmatpush1.bf16.msra.mxu0 %v503
      %553 = vmatprep.subr.bf16.mxu0 %v500
      %554 = vmatpush1.bf16.msra.mxu0 %v499
      %555 = vmatprep.subr.bf16.mxu0 %v496
      %556 = vmatpush1.bf16.msra.mxu0 %v495
      %557 = vmatprep.subr.bf16.mxu0 %v492
      %558 = vmatpush1.bf16.msra.mxu0 %v491
      %559 = vmatprep.subr.bf16.mxu0 %v488
      %560 = vmatpush1.bf16.msra.mxu0 %v487
      %561 = vmatprep.subr.bf16.mxu0 %v484
      %562 = vmatpush1.bf16.msra.mxu0 %v483
      %563 = vmatprep.subr.bf16.mxu0 0
      %564 = vmatpush2.bf16.msra.mxu0 0
      %565 = vmatprep.subr.bf16.mxu0 0
      %566 = vmatpush2.bf16.msra.mxu0 0
      %567 = vmatprep.subr.bf16.mxu0 0
      %568 = vmatpush2.bf16.msra.mxu0 0
      %569 = vmatprep.subr.bf16.mxu0 0
      %570 = vmatpush2.bf16.msra.mxu0 0
      %571 = vmatprep.subr.bf16.mxu0 0
      %572 = vmatpush2.bf16.msra.mxu0 0
      %573 = vmatprep.subr.bf16.mxu0 0
      %574 = vmatpush2.bf16.msra.mxu0 0
      %575 = vmatprep.subr.bf16.mxu0 0
      %576 = vmatpush2.bf16.msra.mxu0 0
      %577 = vmatprep.subr.bf16.mxu0 0
      %578 = vmatpush2.bf16.msra.mxu0 0
      %579 = vmatprep.mubr.bf16.mxu0 0
      %580 = vmatmul.mubr.bf16.gmra.mxu0 %v78
      %v581 = vpop.f32.mrf.mxu0
      %v582 = vadd.f32 %v340, %v581
      %v583 = vpop.f32.mrf.mxu0
      %v584 = vadd.f32 %v342, %v583
      %v585 = vpop.f32.mrf.mxu0
      %v586 = vpop.f32.mrf.mxu0
      %587 = vdwg.mxu0
      %588 = vmatprep.subr.bf16.mxu0 %v514
      %589 = vmatpush1.bf16.msra.mxu0 %v513
      %590 = vmatprep.subr.bf16.mxu0 %v510
      %591 = vmatpush1.bf16.msra.mxu0 %v509
      %592 = vmatprep.subr.bf16.mxu0 %v506
      %593 = vmatpush1.bf16.msra.mxu0 %v505
      %594 = vmatprep.subr.bf16.mxu0 %v502
      %595 = vmatpush1.bf16.msra.mxu0 %v501
      %596 = vmatprep.subr.bf16.mxu0 %v498
      %597 = vmatpush1.bf16.msra.mxu0 %v497
      %598 = vmatprep.subr.bf16.mxu0 %v494
      %599 = vmatpush1.bf16.msra.mxu0 %v493
      %600 = vmatprep.subr.bf16.mxu0 %v490
      %601 = vmatpush1.bf16.msra.mxu0 %v489
      %602 = vmatprep.subr.bf16.mxu0 %v486
      %603 = vmatpush1.bf16.msra.mxu0 %v485
      %604 = vmatprep.subr.bf16.mxu0 0
      %605 = vmatpush2.bf16.msra.mxu0 0
      %606 = vmatprep.subr.bf16.mxu0 0
      %607 = vmatpush2.bf16.msra.mxu0 0
      %608 = vmatprep.subr.bf16.mxu0 0
      %609 = vmatpush2.bf16.msra.mxu0 0
      %610 = vmatprep.subr.bf16.mxu0 0
      %611 = vmatpush2.bf16.msra.mxu0 0
      %612 = vmatprep.subr.bf16.mxu0 0
      %613 = vmatpush2.bf16.msra.mxu0 0
      %614 = vmatprep.subr.bf16.mxu0 0
      %615 = vmatpush2.bf16.msra.mxu0 0
      %616 = vmatprep.subr.bf16.mxu0 0
      %617 = vmatpush2.bf16.msra.mxu0 0
      %618 = vmatprep.subr.bf16.mxu0 0
      %619 = vmatpush2.bf16.msra.mxu0 0
      %620 = vmatprep.mubr.bf16.mxu0 0
      %621 = vmatmul.mubr.bf16.gmra.mxu0 %v78
      %v622 = vpop.f32.mrf.mxu0
      %v623 = vadd.f32 %v381, %v622
      %v624 = vpop.f32.mrf.mxu0
      %v625 = vadd.f32 %v383, %v624
      %v626 = vpop.f32.mrf.mxu0
      %v627 = vpop.f32.mrf.mxu0
      %628 = vdwg.mxu0
      %v629 = vld [vmem:[%s3] sm:$0xf]
      %v631 = vlaneseq
      %v632 = vshrl.u32 %v631, 7
      %v633 = vsub.s32 0, %v632
      %v634 = vrot.slane %v629, %v633
      %v635 = vlaneseq
      %v636 = vshrl.u32 %v635, 7
      %v637 = vsub.s32 1, %v636
      %v638 = vrot.slane %v629, %v637
      %v639 = vlaneseq
      %v640 = vshrl.u32 %v639, 7
      %v641 = vsub.s32 2, %v640
      %v642 = vrot.slane %v629, %v641
      %v643 = vlaneseq
      %v644 = vshrl.u32 %v643, 7
      %v645 = vsub.s32 3, %v644
      %v646 = vrot.slane %v629, %v645
      %v651 = vadd.f32 %v582, %v634
      %v652 = vadd.f32 %v584, %v638
      %v653 = vadd.f32 %v623, %v642
      %v654 = vadd.f32 %v625, %v646
      %v655 = vxor.u32 %v651, 2147483648
      %v656 = vmul.f32 %v655, 1.442695
      %v657 = vpow.pop %v656
      %v658 = vadd.f32 %v657, 1.0
      %v659 = vrcp.pop %v658
      %v660 = vmul.f32 1.0, %v659
      %v661 = vxor.u32 %v652, 2147483648
      %v662 = vmul.f32 %v661, 1.442695
      %v663 = vpow.pop %v662
      %v664 = vadd.f32 %v663, 1.0
      %v665 = vrcp.pop %v664
      %v666 = vmul.f32 1.0, %v665
      %v667 = vtanh.pop %v653
      %v668 = vxor.u32 %v654, 2147483648
      %v669 = vmul.f32 %v668, 1.442695
      %v670 = vpow.pop %v669
      %v671 = vadd.f32 %v670, 1.0
      %v672 = vrcp.pop %v671
      %v673 = vmul.f32 1.0, %v672
      %v674 = vld [vmem:[%s5] sm:$0xff]
      %v675 = vmul.f32 %v666, %v674
      %v676 = vmul.f32 %v660, %v667
      %v677 = vadd.f32 %v675, %v676
      %v678 = vtanh.pop %v677
      %v679 = vmul.f32 %v673, %v678
      %680 = vst [vmem:[%s10] sm:$0xff] %v677
      %681 = vst [vmem:[%s9] sm:$0xff] %v679
      %v682 = vpack.c.bf16 %v679, %v679
      %683 = vst [vmem:[#allocation2] sm:$0xf] %v682
    $region49: #{decoder_forward.1} parent=1 // pred_fallthru
      _
    %v684 = vld [vmem:[#allocation2] sm:$0xf]
    %v685 = vld [vmem:[#allocation7] sm:$0xf]
    %v686 = vld [vmem:[#allocation7 + $0x4] sm:$0xf]
    %v687 = vld [vmem:[#allocation7 + $0x8] sm:$0xf]
    %v688 = vld [vmem:[#allocation7 + $0xc] sm:$0xf]
    %v689 = vld [vmem:[#allocation7 + $0x10] sm:$0xf]
    %v690 = vld [vmem:[#allocation7 + $0x14] sm:$0xf]
    %v691 = vld [vmem:[#allocation7 + $0x18] sm:$0xf]
    %v692 = vld [vmem:[#allocation7 + $0x1c] sm:$0xf]
    %v693 = vld [vmem:[#allocation7 + $0x20] sm:$0xf]
    %v694 = vld [vmem:[#allocation7 + $0x24] sm:$0xf]
    %v695 = vld [vmem:[#allocation7 + $0x28] sm:$0xf]
    %v696 = vld [vmem:[#allocation7 + $0x2c] sm:$0xf]
    %v697 = vld [vmem:[#allocation7 + $0x30] sm:$0xf]
    %v698 = vld [vmem:[#allocation7 + $0x34] sm:$0xf]
    %v699 = vld [vmem:[#allocation7 + $0x38] sm:$0xf]
    %v700 = vld [vmem:[#allocation7 + $0x3c] sm:$0xf]
    %v701 = vld [vmem:[%s7] sm:$0x1]
    %v703 = vlaneseq
    %v704 = vshrl.u32 %v703, 7
    %v705 = vsub.s32 0, %v704
    %v706 = vrot.slane %v701, %v705
    %v724 = vunpack.c.l.b16 %v685
    %v725 = vunpack.c.l.b16 %v686
    %v726 = vunpack.c.l.b16 %v687
    %v727 = vunpack.c.l.b16 %v688
    %v728 = vunpack.c.l.b16 %v689
    %v729 = vunpack.c.l.b16 %v690
    %v730 = vunpack.c.l.b16 %v691
    %v731 = vunpack.c.l.b16 %v692
    %v732 = vunpack.c.l.b16 %v693
    %v733 = vunpack.c.l.b16 %v694
    %v734 = vunpack.c.l.b16 %v695
    %v735 = vunpack.c.l.b16 %v696
    %v736 = vunpack.c.l.b16 %v697
    %v737 = vunpack.c.l.b16 %v698
    %v738 = vunpack.c.l.b16 %v699
    %v739 = vunpack.c.l.b16 %v700
    %v740 = vpack.c.b16 %v725, %v724
    %v741 = vpack.c.b16 %v727, %v726
    %v742 = vpack.c.b16 %v729, %v728
    %v743 = vpack.c.b16 %v731, %v730
    %v744 = vpack.c.b16 %v733, %v732
    %v745 = vpack.c.b16 %v735, %v734
    %v746 = vpack.c.b16 %v737, %v736
    %v747 = vpack.c.b16 %v739, %v738
    %756 = vmatprep.subr.bf16.mxu0 0
    %757 = vmatpush1.bf16.msra.mxu0 %v747
    %758 = vmatprep.subr.bf16.mxu0 0
    %759 = vmatpush1.bf16.msra.mxu0 %v746
    %760 = vmatprep.subr.bf16.mxu0 0
    %761 = vmatpush1.bf16.msra.mxu0 %v745
    %762 = vmatprep.subr.bf16.mxu0 0
    %763 = vmatpush1.bf16.msra.mxu0 %v744
    %764 = vmatprep.subr.bf16.mxu0 0
    %765 = vmatpush1.bf16.msra.mxu0 %v743
    %766 = vmatprep.subr.bf16.mxu0 0
    %767 = vmatpush1.bf16.msra.mxu0 %v742
    %768 = vmatprep.subr.bf16.mxu0 0
    %769 = vmatpush1.bf16.msra.mxu0 %v741
    %770 = vmatprep.subr.bf16.mxu0 0
    %771 = vmatpush1.bf16.msra.mxu0 %v740
    %772 = vmatprep.subr.bf16.mxu0 0
    %773 = vmatpush2.bf16.msra.mxu0 0
    %774 = vmatprep.subr.bf16.mxu0 0
    %775 = vmatpush2.bf16.msra.mxu0 0
    %776 = vmatprep.subr.bf16.mxu0 0
    %777 = vmatpush2.bf16.msra.mxu0 0
    %778 = vmatprep.subr.bf16.mxu0 0
    %779 = vmatpush2.bf16.msra.mxu0 0
    %780 = vmatprep.subr.bf16.mxu0 0
    %781 = vmatpush2.bf16.msra.mxu0 0
    %782 = vmatprep.subr.bf16.mxu0 0
    %783 = vmatpush2.bf16.msra.mxu0 0
    %784 = vmatprep.subr.bf16.mxu0 0
    %785 = vmatpush2.bf16.msra.mxu0 0
    %786 = vmatprep.subr.bf16.mxu0 0
    %787 = vmatpush2.bf16.msra.mxu0 0
    %788 = vmatprep.mubr.bf16.mxu0 0
    %789 = vmatmul.mubr.bf16.gmra.mxu0 %v684
    %v790 = vpop.f32.mrf.mxu0
    %v791 = vadd.f32 %v706, %v790
    %v792 = vpop.f32.mrf.mxu0
    %v793 = vpop.f32.mrf.mxu0
    %v794 = vpop.f32.mrf.mxu0
    %795 = vdwg.mxu0
    %796 = vst [vmem:[%s8] sm:$0xff] %v791
    // Predicated region
    $region50: #{decoder_forward.1} parent=1 // pred_check
      _
    $region51: #{decoder_forward.1} parent=1 // pred_check_branch
      %798 = sbr.rel (0) target = $region53
    $region52: #{decoder_forward.1} parent=1 // pred_region
      _
    $region53: #{decoder_forward.1} parent=1 // pred_fallthru
      _
    // Predicated region
    $region54: #{decoder_forward.1} parent=1 // pred_check
      _
    $region55: #{decoder_forward.1} parent=1 // pred_check_branch
      %800 = sbr.rel (0) target = $region57
    $region56: #{decoder_forward.1} parent=1 // pred_region
      _
    $region57: #{decoder_forward.1} parent=1 // pred_fallthru
      _
    // Predicated region
    $region58: #{decoder_forward.1} parent=1 // pred_check
      _
    $region59: #{decoder_forward.1} parent=1 // pred_check_branch
      %802 = sbr.rel (0) target = $region61
    $region60: #{decoder_forward.1} parent=1 // pred_region
      _
    $region61: #{decoder_forward.1} parent=1 // pred_fallthru
      _
    // Predicated region
    $region62: #{decoder_forward.1} parent=1 // pred_check
      _
    $region63: #{decoder_forward.1} parent=1 // pred_check_branch
      %804 = sbr.rel (0) target = $region65
    $region64: #{decoder_forward.1} parent=1 // pred_region
      _
    $region65: #{decoder_forward.1} parent=1 // pred_fallthru
      _
    // Predicated region
    $region66: #{decoder_forward.1} parent=1 // pred_check
      _
    $region67: #{decoder_forward.1} parent=1 // pred_check_branch
      %806 = sbr.rel (0) target = $region69
    $region68: #{decoder_forward.1} parent=1 // pred_region
      _
    $region69: #{decoder_forward.1} parent=1 // pred_fallthru
      _
    // Predicated region
    $region70: #{decoder_forward.1} parent=1 // pred_check
      _
    $region71: #{decoder_forward.1} parent=1 // pred_check_branch
      %808 = sbr.rel (0) target = $region73
    $region72: #{decoder_forward.1} parent=1 // pred_region
      _
    $region73: #{decoder_forward.1} parent=1 // pred_fallthru
      _
    %809 = vsyncpa [#allocation4], 1
    %810 = vsyncpa [#allocation6], 1

</llo_original>
